<compile_context>
chip_gen: v7x
topology: tpu7x:2x2x1
jax: 0.10.0
libtpu: 0.0.40
codegen_flags: <defaults>
</compile_context>

<pallas_src>
import jax
import jax.numpy as jnp
from jax.experimental import pallas as pl
from jax.experimental.pallas import tpu as pltpu


_OUT_PAD = 128      # lane-dense padded width of the final (hidden -> 2) layer
_NEG_SLOPE = 0.1    # LeakyReLU negative slope


def _mlp_kernel(x_ref, w1_ref, w2_ref, w3_ref, w4_ref, bh_ref, b4_ref, o_ref):
    """One batch tile of the full 4-layer MLP (BN already folded into W/b)."""
    b_all = bh_ref[...]                                   # [3, H] f32 folded biases

    def hidden(h_f32, w_ref, row):
        # Linear (+ folded BatchNorm): bf16 MXU matmul, f32 accumulation.
        y = jnp.dot(h_f32.astype(jnp.bfloat16), w_ref[...],
                    preferred_element_type=jnp.float32)
        y = y + b_all[row:row + 1, :]
        # LeakyReLU(0.1) as one vmax (slope < 1); Dropout = identity in eval.
        return jnp.maximum(y, _NEG_SLOPE * y)

    h = x_ref[...].astype(jnp.float32)
    h = hidden(h, w1_ref, 0)
    h = hidden(h, w2_ref, 1)
    h = hidden(h, w3_ref, 2)
    # Final Linear, zero-padded to 128 output lanes (columns >= 2 are zero).
    o_ref[...] = (jnp.dot(h.astype(jnp.bfloat16), w4_ref[...],
                          preferred_element_type=jnp.float32)
                  + b4_ref[...]).astype(o_ref.dtype)


def _round_up(n, m):
    return ((n + m - 1) // m) * m


def titanic_nn_forward(x, params, block_b=512):
    """x: [B, input_dim] float32.  params: dict of BN-folded layer parameters."""
    B, D = x.shape
    H = params["w1"].shape[1]

    tb = min(block_b, _round_up(B, 8))      # batch tile (multiple of 8 sublanes)
    bp = _round_up(B, tb)                   # padded batch
    if bp != B:
        x = jnp.pad(x, ((0, bp - B), (0, 0)))
    n_blocks = bp // tb

    def pinned(shape):
        # Constant index_map -> weight stays resident across batch tiles.
        return pl.BlockSpec(shape, lambda i: (0, 0))

    out = pl.pallas_call(
        _mlp_kernel,
        out_shape=jax.ShapeDtypeStruct((bp, _OUT_PAD), jnp.float32),
        grid_spec=pltpu.PrefetchScalarGridSpec(
            num_scalar_prefetch=0,
            grid=(n_blocks,),
            in_specs=[
                pl.BlockSpec((tb, D), lambda i: (i, 0)),   # x: batch-tiled
                pinned((D, H)),                            # w1 (BN-folded, bf16)
                pinned((H, H)),                            # w2
                pinned((H, H)),                            # w3
                pinned((H, _OUT_PAD)),                     # w4 (zero-padded)
                pinned((3, H)),                            # packed folded biases
                pinned((1, _OUT_PAD)),                     # b4 (zero-padded)
            ],
            out_specs=pl.BlockSpec((tb, _OUT_PAD), lambda i: (i, 0)),
        ),
        compiler_params=pltpu.CompilerParams(
            dimension_semantics=("parallel",)),
    )(x, params["w1"], params["w2"], params["w3"], params["w4"],
      params["bh"], params["b4"])
    return out[:B, :2]


def init_params(key, input_dim, hidden_units=256, hidden_layers=3, eps=1e-5):
    """Deterministic synthetic parameters; BN folded into the Linear layers."""
    dims = [input_dim] + [hidden_units] * hidden_layers
    keys = jax.random.split(key, 4 * hidden_layers + 2)
    k_iter = iter(keys)
    params = {}
    folded_biases = []

    for li in range(hidden_layers):
        din, dout = dims[li], dims[li + 1]
        w = jax.random.normal(next(k_iter), (din, dout), jnp.float32) / jnp.sqrt(din)
        b = jax.random.normal(next(k_iter), (1, dout), jnp.float32) * 0.01
        # BatchNorm1d parameters / running stats (eval mode).
        gamma = 1.0 + 0.1 * jax.random.normal(next(k_iter), (1, dout), jnp.float32)
        beta = 0.05 * jax.random.normal(next(k_iter), (1, dout), jnp.float32)
        running_mean = jnp.zeros((1, dout), jnp.float32) + 0.01 * li
        running_var = jnp.ones((1, dout), jnp.float32) * (1.0 + 0.1 * li)
        scale = gamma / jnp.sqrt(running_var + eps)
        shift = beta - running_mean * scale
        # Fold BN into Linear:  (x @ W + b) * s + t  ==  x @ (W * s) + (b * s + t)
        params[f"w{li + 1}"] = (w * scale).astype(jnp.bfloat16)
        folded_biases.append(b * scale + shift)

    params["bh"] = jnp.concatenate(folded_biases, axis=0)        # [3, H] f32

    # Final Linear(hidden_units, 2), zero-padded to 128 lane-dense columns.
    w4 = jax.random.normal(next(k_iter), (hidden_units, 2), jnp.float32) / jnp.sqrt(hidden_units)
    b4 = jax.random.normal(next(k_iter), (1, 2), jnp.float32) * 0.01
    w4p = jnp.zeros((hidden_units, _OUT_PAD), jnp.float32).at[:, :2].set(w4)
    b4p = jnp.zeros((1, _OUT_PAD), jnp.float32).at[:, :2].set(b4)
    params["w4"] = w4p.astype(jnp.bfloat16)
    params["b4"] = b4p
    return params


def reference_forward(x, params):
    """Pure-JAX reference using the same bf16 weights / f32 accumulation."""
    h = x.astype(jnp.float32)
    for li in range(3):
        y = jnp.dot(h.astype(jnp.bfloat16), params[f"w{li + 1}"],
                    preferred_element_type=jnp.float32)
        y = y + params["bh"][li:li + 1, :]
        h = jnp.maximum(y, _NEG_SLOPE * y)
    y = jnp.dot(h.astype(jnp.bfloat16), params["w4"],
                preferred_element_type=jnp.float32) + params["b4"]
    return y[:, :2]


if __name__ == "__main__":
    key = jax.random.PRNGKey(0)
    k_x, k_p = jax.random.split(key)

    batch = 8
    input_dim = 16        # e.g. engineered Titanic feature count
    hidden_units = 256    # module default
    hidden_layers = 3     # module default

    x = jax.random.normal(k_x, (batch, input_dim), jnp.float32)
    params = init_params(k_p, input_dim, hidden_units, hidden_layers)

    out = titanic_nn_forward(x, params)
    out = jax.block_until_ready(out)

    ref = reference_forward(x, params)
    assert out.shape == (batch, 2), out.shape
    assert jnp.allclose(out, ref, atol=2e-2, rtol=2e-2), "mismatch vs reference"

    print("KERNEL_OK")
</pallas_src>

<mosaic_0001>
module attributes {stable_mosaic.version = 11 : i64} {
  func.func @_mlp_kernel(%arg0: i32, %arg1: memref<8x16xf32, #tpu.memory_space<vmem>>, %arg2: memref<16x256xbf16, #tpu.memory_space<vmem>>, %arg3: memref<256x256xbf16, #tpu.memory_space<vmem>>, %arg4: memref<256x256xbf16, #tpu.memory_space<vmem>>, %arg5: memref<256x128xbf16, #tpu.memory_space<vmem>>, %arg6: memref<3x256xf32, #tpu.memory_space<vmem>>, %arg7: memref<1x128xf32, #tpu.memory_space<vmem>>, %arg8: memref<8x128xf32, #tpu.memory_space<vmem>>) attributes {dimension_semantics = [#tpu.dimension_semantics<parallel>], iteration_bounds = array<i64: 1>, scalar_prefetch = 0 : i64, scratch_operands = 0 : i64, tpu.core_type = #tpu.core_type<tc>, window_params = [{transform_indices = @transform_0, window_bounds = array<i64: 8, 16>}, {pipeline_mode = #tpu.pipeline_mode<synchronous>, transform_indices = @transform_1, window_bounds = array<i64: 16, 256>}, {pipeline_mode = #tpu.pipeline_mode<synchronous>, transform_indices = @transform_2, window_bounds = array<i64: 256, 256>}, {pipeline_mode = #tpu.pipeline_mode<synchronous>, transform_indices = @transform_3, window_bounds = array<i64: 256, 256>}, {pipeline_mode = #tpu.pipeline_mode<synchronous>, transform_indices = @transform_4, window_bounds = array<i64: 256, 128>}, {pipeline_mode = #tpu.pipeline_mode<synchronous>, transform_indices = @transform_5, window_bounds = array<i64: 3, 256>}, {pipeline_mode = #tpu.pipeline_mode<synchronous>, transform_indices = @transform_6, window_bounds = array<i64: 1, 128>}, {transform_indices = @transform_7, window_bounds = array<i64: 8, 128>}]} {
    %c0 = arith.constant 0 : index
    %c0_0 = arith.constant 0 : index
    %0 = vector.load %arg6[%c0, %c0_0] : memref<3x256xf32, #tpu.memory_space<vmem>>, vector<3x256xf32>
    %c0_1 = arith.constant 0 : index
    %c0_2 = arith.constant 0 : index
    %1 = vector.load %arg1[%c0_1, %c0_2] : memref<8x16xf32, #tpu.memory_space<vmem>>, vector<8x16xf32>
    %2 = arith.truncf %1 : vector<8x16xf32> to vector<8x16xbf16>
    %c0_3 = arith.constant 0 : index
    %c0_4 = arith.constant 0 : index
    %3 = vector.load %arg2[%c0_3, %c0_4] : memref<16x256xbf16, #tpu.memory_space<vmem>>, vector<16x256xbf16>
    %cst = arith.constant dense<0.000000e+00> : vector<8x256xf32>
    %4 = tpu.matmul %2, %3, %cst {dimension_numbers = #tpu.dot_dimension_numbers<[1], [0], [0], [1], [0, 0, 1, 1], [], []>} : vector<8x16xbf16>, vector<16x256xbf16>, vector<8x256xf32> -> vector<8x256xf32>
    %5 = vector.extract_strided_slice %0 {offsets = [0, 0], sizes = [1, 256], strides = [1, 1]} : vector<3x256xf32> to vector<1x256xf32>
    %6 = vector.broadcast %5 : vector<1x256xf32> to vector<8x256xf32>
    %7 = arith.addf %4, %6 : vector<8x256xf32>
    %cst_5 = arith.constant 1.000000e-01 : f32
    %8 = vector.broadcast %cst_5 : f32 to vector<8x256xf32>
    %9 = arith.mulf %8, %7 : vector<8x256xf32>
    %10 = arith.maximumf %7, %9 : vector<8x256xf32>
    %11 = arith.truncf %10 : vector<8x256xf32> to vector<8x256xbf16>
    %c0_6 = arith.constant 0 : index
    %c0_7 = arith.constant 0 : index
    %12 = vector.load %arg3[%c0_6, %c0_7] : memref<256x256xbf16, #tpu.memory_space<vmem>>, vector<256x256xbf16>
    %cst_8 = arith.constant dense<0.000000e+00> : vector<8x256xf32>
    %13 = tpu.matmul %11, %12, %cst_8 {dimension_numbers = #tpu.dot_dimension_numbers<[1], [0], [0], [1], [0, 0, 1, 1], [], []>} : vector<8x256xbf16>, vector<256x256xbf16>, vector<8x256xf32> -> vector<8x256xf32>
    %14 = vector.extract_strided_slice %0 {offsets = [1, 0], sizes = [1, 256], strides = [1, 1]} : vector<3x256xf32> to vector<1x256xf32>
    %15 = vector.broadcast %14 : vector<1x256xf32> to vector<8x256xf32>
    %16 = arith.addf %13, %15 : vector<8x256xf32>
    %cst_9 = arith.constant 1.000000e-01 : f32
    %17 = vector.broadcast %cst_9 : f32 to vector<8x256xf32>
    %18 = arith.mulf %17, %16 : vector<8x256xf32>
    %19 = arith.maximumf %16, %18 : vector<8x256xf32>
    %20 = arith.truncf %19 : vector<8x256xf32> to vector<8x256xbf16>
    %c0_10 = arith.constant 0 : index
    %c0_11 = arith.constant 0 : index
    %21 = vector.load %arg4[%c0_10, %c0_11] : memref<256x256xbf16, #tpu.memory_space<vmem>>, vector<256x256xbf16>
    %cst_12 = arith.constant dense<0.000000e+00> : vector<8x256xf32>
    %22 = tpu.matmul %20, %21, %cst_12 {dimension_numbers = #tpu.dot_dimension_numbers<[1], [0], [0], [1], [0, 0, 1, 1], [], []>} : vector<8x256xbf16>, vector<256x256xbf16>, vector<8x256xf32> -> vector<8x256xf32>
    %23 = vector.extract_strided_slice %0 {offsets = [2, 0], sizes = [1, 256], strides = [1, 1]} : vector<3x256xf32> to vector<1x256xf32>
    %24 = vector.broadcast %23 : vector<1x256xf32> to vector<8x256xf32>
    %25 = arith.addf %22, %24 : vector<8x256xf32>
    %cst_13 = arith.constant 1.000000e-01 : f32
    %26 = vector.broadcast %cst_13 : f32 to vector<8x256xf32>
    %27 = arith.mulf %26, %25 : vector<8x256xf32>
    %28 = arith.maximumf %25, %27 : vector<8x256xf32>
    %29 = arith.truncf %28 : vector<8x256xf32> to vector<8x256xbf16>
    %c0_14 = arith.constant 0 : index
    %c0_15 = arith.constant 0 : index
    %30 = vector.load %arg5[%c0_14, %c0_15] : memref<256x128xbf16, #tpu.memory_space<vmem>>, vector<256x128xbf16>
    %cst_16 = arith.constant dense<0.000000e+00> : vector<8x128xf32>
    %31 = tpu.matmul %29, %30, %cst_16 {dimension_numbers = #tpu.dot_dimension_numbers<[1], [0], [0], [1], [0, 0, 1, 1], [], []>} : vector<8x256xbf16>, vector<256x128xbf16>, vector<8x128xf32> -> vector<8x128xf32>
    %c0_17 = arith.constant 0 : index
    %c0_18 = arith.constant 0 : index
    %32 = vector.load %arg7[%c0_17, %c0_18] : memref<1x128xf32, #tpu.memory_space<vmem>>, vector<1x128xf32>
    %33 = vector.broadcast %32 : vector<1x128xf32> to vector<8x128xf32>
    %34 = arith.addf %31, %33 : vector<8x128xf32>
    %c0_19 = arith.constant 0 : index
    %c0_20 = arith.constant 0 : index
    %35 = vector.load %arg8[%c0_19, %c0_20] : memref<8x128xf32, #tpu.memory_space<vmem>>, vector<8x128xf32>
    tpu.vector_store %arg8[%c0_19, %c0_20], %34 {strides = array<i32>} : memref<8x128xf32, #tpu.memory_space<vmem>>, vector<8x128xf32>,
    return
  }
  func.func @transform_0(%arg0: i32) -> (i32, i32) {
    %c0_i32 = arith.constant 0 : i32
    %c0_i32_0 = arith.constant 0 : i32
    return %arg0, %c0_i32 : i32, i32
  }
  func.func @transform_1(%arg0: i32) -> (i32, i32) {
    %c0_i32 = arith.constant 0 : i32
    %c0_i32_0 = arith.constant 0 : i32
    %c0_i32_1 = arith.constant 0 : i32
    return %c0_i32, %c0_i32_0 : i32, i32
  }
  func.func @transform_2(%arg0: i32) -> (i32, i32) {
    %c0_i32 = arith.constant 0 : i32
    %c0_i32_0 = arith.constant 0 : i32
    %c0_i32_1 = arith.constant 0 : i32
    return %c0_i32, %c0_i32_0 : i32, i32
  }
  func.func @transform_3(%arg0: i32) -> (i32, i32) {
    %c0_i32 = arith.constant 0 : i32
    %c0_i32_0 = arith.constant 0 : i32
    %c0_i32_1 = arith.constant 0 : i32
    return %c0_i32, %c0_i32_0 : i32, i32
  }
  func.func @transform_4(%arg0: i32) -> (i32, i32) {
    %c0_i32 = arith.constant 0 : i32
    %c0_i32_0 = arith.constant 0 : i32
    %c0_i32_1 = arith.constant 0 : i32
    return %c0_i32, %c0_i32_0 : i32, i32
  }
  func.func @transform_5(%arg0: i32) -> (i32, i32) {
    %c0_i32 = arith.constant 0 : i32
    %c0_i32_0 = arith.constant 0 : i32
    %c0_i32_1 = arith.constant 0 : i32
    return %c0_i32, %c0_i32_0 : i32, i32
  }
  func.func @transform_6(%arg0: i32) -> (i32, i32) {
    %c0_i32 = arith.constant 0 : i32
    %c0_i32_0 = arith.constant 0 : i32
    %c0_i32_1 = arith.constant 0 : i32
    return %c0_i32, %c0_i32_0 : i32, i32
  }
  func.func @transform_7(%arg0: i32) -> (i32, i32) {
    %c0_i32 = arith.constant 0 : i32
    %c0_i32_0 = arith.constant 0 : i32
    return %arg0, %c0_i32 : i32, i32
  }
}

</mosaic_0001>

<llo_original>
// kernel: tpu_custom_call.1
$region0: #{tpu_custom_call.1}
  #allocation0 [shape = 'u32[]', space=smem, size = 0x4, offset = 0x4, fixed_abs, tag = 'smem constant byte address 0x4 - core index']
  #allocation1 [shape = 'u32[144,128]{1,0:T(1,128)}', space=vmem, size = 0x12000, scoped, tag = 'internal scratch']
  %s0 = inlined_call_operand.hbm [shape: f32[8,16], index: 0, kind: input, shape index: {}]
  %s1 = inlined_call_operand.hbm [shape: bf16[16,256], index: 1, kind: input, shape index: {}]
  %s2 = inlined_call_operand.hbm [shape: bf16[256,256], index: 2, kind: input, shape index: {}]
  %s3 = inlined_call_operand.hbm [shape: bf16[256,256], index: 3, kind: input, shape index: {}]
  %s4 = inlined_call_operand.hbm [shape: bf16[256,128], index: 4, kind: input, shape index: {}]
  %s5 = inlined_call_operand.vmem [shape: f32[3,256], index: 5, kind: input, shape index: {}]
  %s6 = inlined_call_operand.vmem [shape: f32[1,128], index: 6, kind: input, shape index: {}]
  %s7 = inlined_call_operand.hbm [shape: f32[8,128], index: 7, kind: output, shape index: {}]
  %s8 = sld [smem:[#allocation0]]
  $region58: #{tpu_custom_call.1} parent=0
    _
  %s10 = ssub.s32 1, %s8
  %s11 = scalar_select 0, %s10, %s8
  $region1: #{tpu_custom_call.1} parent=0
    #allocation2 [shape = 'u8[4096]{0}', space=vmem, size = 0x1000, scoped, tag = 'input window, operand 0, single buffered']
    #allocation3 [shape = 's32[1]{0}', space=sflag, size = 0x4, scoped, tag = 'scoped memory for tpu_custom_call.1']
    #allocation4 [shape = 's32[1]{0}', space=sflag, size = 0x4, scoped, tag = 'scoped memory for tpu_custom_call.1']
    #allocation5 [shape = 'u8[8192]{0}', space=vmem, size = 0x2000, scoped, tag = 'input window, operand 1, single buffered']
    #allocation6 [shape = 's32[1]{0}', space=sflag, size = 0x4, scoped, tag = 'scoped memory for tpu_custom_call.1']
    #allocation7 [shape = 'u8[131072]{0}', space=vmem, size = 0x20000, scoped, tag = 'input window, operand 2, single buffered']
    #allocation8 [shape = 'u8[131072]{0}', space=vmem, size = 0x20000, scoped, tag = 'input window, operand 3, single buffered']
    #allocation9 [shape = 's32[1]{0}', space=sflag, size = 0x4, scoped, tag = 'scoped memory for tpu_custom_call.1']
    #allocation10 [shape = 'u8[65536]{0}', space=vmem, size = 0x10000, scoped, tag = 'input window, operand 4, single buffered']
    #allocation11 [shape = 'u8[4096]{0}', space=vmem, size = 0x1000, scoped, tag = 'output window, operand 0, single buffered']
    %12 = vsyncpa [#allocation3], 0
    %13 = vsyncpa [#allocation6], 0
    %14 = vsyncpa [#allocation9], 0
    %15 = vsyncpa [#allocation4], 0
    // Predicated region
    $region2: #{tpu_custom_call.1} parent=1 // pred_check
      _
    $region3: #{tpu_custom_call.1} parent=1 // pred_check_branch
      %17 = sbr.rel (0) target = $region5
    $region4: #{tpu_custom_call.1} parent=1 // pred_region
      %s19 = ssub.s32 128, 128
      %20 = vsyncadd [#allocation3], %s19
      %s22 = sshll.u32 [#allocation2], 4
      %s23 = int_to_ptr.vmem [resolvable:$true] %s22
      %25 = dma.hbm_to_vmem [thread:$0]  %s0, 128, %s23, [#allocation3]
    $region5: #{tpu_custom_call.1} parent=1 // pred_fallthru
      _
    // Predicated region
    $region6: #{tpu_custom_call.1} parent=1 // pred_check
      _
    $region7: #{tpu_custom_call.1} parent=1 // pred_check_branch
      %27 = sbr.rel (0) target = $region9
    $region8: #{tpu_custom_call.1} parent=1 // pred_region
      %s29 = ssub.s32 256, 256
      %30 = vsyncadd [#allocation6], %s29
      %s31 = sshll.u32 [#allocation5], 4
      %s32 = int_to_ptr.vmem [resolvable:$true] %s31
      %37 = dma.hbm_to_vmem [thread:$0]  %s1, 256, %s32, [#allocation6], 128, 128, 8
    $region9: #{tpu_custom_call.1} parent=1 // pred_fallthru
      _
    // Predicated region
    $region10: #{tpu_custom_call.1} parent=1 // pred_check
      _
    $region11: #{tpu_custom_call.1} parent=1 // pred_check_branch
      %39 = sbr.rel (0) target = $region13
    $region12: #{tpu_custom_call.1} parent=1 // pred_region
      %s41 = ssub.s32 4096, 4096
      %42 = vsyncadd [#allocation6], %s41
      %s43 = sshll.u32 [#allocation7], 4
      %s44 = int_to_ptr.vmem [resolvable:$true] %s43
      %49 = dma.hbm_to_vmem [thread:$0]  %s2, 4096, %s44, [#allocation6], 128, 128, 8
    $region13: #{tpu_custom_call.1} parent=1 // pred_fallthru
      _
    // Predicated region
    $region14: #{tpu_custom_call.1} parent=1 // pred_check
      _
    $region15: #{tpu_custom_call.1} parent=1 // pred_check_branch
      %51 = sbr.rel (0) target = $region17
    $region16: #{tpu_custom_call.1} parent=1 // pred_region
      %s53 = ssub.s32 4096, 4096
      %54 = vsyncadd [#allocation9], %s53
      %s55 = sshll.u32 [#allocation8], 4
      %s56 = int_to_ptr.vmem [resolvable:$true] %s55
      %61 = dma.hbm_to_vmem [thread:$0]  %s3, 4096, %s56, [#allocation9], 128, 128, 8
    $region17: #{tpu_custom_call.1} parent=1 // pred_fallthru
      _
    // Predicated region
    $region18: #{tpu_custom_call.1} parent=1 // pred_check
      _
    $region19: #{tpu_custom_call.1} parent=1 // pred_check_branch
      %63 = sbr.rel (0) target = $region21
    $region20: #{tpu_custom_call.1} parent=1 // pred_region
      %s65 = ssub.s32 2048, 2048
      %66 = vsyncadd [#allocation9], %s65
      %s67 = sshll.u32 [#allocation10], 4
      %s68 = int_to_ptr.vmem [resolvable:$true] %s67
      %73 = dma.hbm_to_vmem [thread:$0]  %s4, 2048, %s68, [#allocation9], 64, 64, 4
    $region21: #{tpu_custom_call.1} parent=1 // pred_fallthru
      _
    // Predicated region
    $region22: #{tpu_custom_call.1} parent=1 // pred_check
      _
    $region23: #{tpu_custom_call.1} parent=1 // pred_check_branch
      %75 = sbr.rel (0) target = $region25
    $region24: #{tpu_custom_call.1} parent=1 // pred_region
      _
    $region25: #{tpu_custom_call.1} parent=1 // pred_fallthru
      _
    // Predicated region
    $region26: #{tpu_custom_call.1} parent=1 // pred_check
      _
    $region27: #{tpu_custom_call.1} parent=1 // pred_check_branch
      %77 = sbr.rel (0) target = $region29
    $region28: #{tpu_custom_call.1} parent=1 // pred_region
      _
    $region29: #{tpu_custom_call.1} parent=1 // pred_fallthru
      _
    // Predicated region
    $region30: #{tpu_custom_call.1} parent=1 // pred_check
      _
    $region31: #{tpu_custom_call.1} parent=1 // pred_check_branch
      %79 = sbr.rel (0) target = $region33
    $region32: #{tpu_custom_call.1} parent=1 // pred_region
      %80 = dma.done [#allocation3], 128
    $region33: #{tpu_custom_call.1} parent=1 // pred_fallthru
      _
    // Predicated region
    $region34: #{tpu_custom_call.1} parent=1 // pred_check
      _
    $region35: #{tpu_custom_call.1} parent=1 // pred_check_branch
      %82 = sbr.rel (0) target = $region37
    $region36: #{tpu_custom_call.1} parent=1 // pred_region
      %83 = dma.done [#allocation6], 256
    $region37: #{tpu_custom_call.1} parent=1 // pred_fallthru
      _
    // Predicated region
    $region38: #{tpu_custom_call.1} parent=1 // pred_check
      _
    $region39: #{tpu_custom_call.1} parent=1 // pred_check_branch
      %85 = sbr.rel (0) target = $region41
    $region40: #{tpu_custom_call.1} parent=1 // pred_region
      %86 = dma.done [#allocation6], 4096
    $region41: #{tpu_custom_call.1} parent=1 // pred_fallthru
      _
    // Predicated region
    $region42: #{tpu_custom_call.1} parent=1 // pred_check
      _
    $region43: #{tpu_custom_call.1} parent=1 // pred_check_branch
      %88 = sbr.rel (0) target = $region45
    $region44: #{tpu_custom_call.1} parent=1 // pred_region
      %89 = dma.done [#allocation9], 4096
    $region45: #{tpu_custom_call.1} parent=1 // pred_fallthru
      _
    // Predicated region
    $region46: #{tpu_custom_call.1} parent=1 // pred_check
      _
    $region47: #{tpu_custom_call.1} parent=1 // pred_check_branch
      %91 = sbr.rel (0) target = $region49
    $region48: #{tpu_custom_call.1} parent=1 // pred_region
      %92 = dma.done [#allocation9], 2048
    $region49: #{tpu_custom_call.1} parent=1 // pred_fallthru
      _
    %v94 = vld [vmem:[%s5] sm:$0x77]
    %v95 = vld [vmem:[#allocation2] sm:$0xff]
    %v96 = vpack.c.bf16 %v95, %v95
    %v97 = vld [vmem:[#allocation5] sm:$0xff]
    %v98 = vld [vmem:[#allocation5 + $0x8] sm:$0xff]
    %v100 = vlaneseq
    %v101 = vshrl.u32 %v100, 7
    %v102 = vsub.s32 0, %v101
    %v103 = vrot.slane %v94, %v102
    %v104 = vlaneseq
    %v105 = vshrl.u32 %v104, 7
    %v106 = vsub.s32 4, %v105
    %v107 = vrot.slane %v94, %v106
    %v110 = vlaneseq
    %v111 = vshrl.u32 %v110, 7
    %v112 = vsub.s32 0, %v111
    %v113 = vrot.slane %v103, %v112
    %v114 = vlaneseq
    %v115 = vshrl.u32 %v114, 7
    %v116 = vsub.s32 0, %v115
    %v117 = vrot.slane %v107, %v116
    %v120 = vunpack.c.l.b16 %v97
    %v121 = vunpack.c.h.b16 %v97
    %v122 = vunpack.c.l.b16 %v98
    %v123 = vunpack.c.h.b16 %v98
    %v124 = vpack.c.b16 %v122, %v120
    %v125 = vpack.c.b16 %v123, %v121
    %vm128 = vcmask 130048
    %v130 = vsel %vm128, %v96, 0
    %132 = vmatprep.subr.bf16.mxu0 %v125
    %133 = vmatpush1.bf16.msra.mxu0 %v124
    %134 = vmatprep.subr.bf16.mxu0 0
    %135 = vmatpush1.bf16.msra.mxu0 0
    %136 = vmatprep.subr.bf16.mxu0 0
    %137 = vmatpush1.bf16.msra.mxu0 0
    %138 = vmatprep.subr.bf16.mxu0 0
    %139 = vmatpush1.bf16.msra.mxu0 0
    %140 = vmatprep.subr.bf16.mxu0 0
    %141 = vmatpush1.bf16.msra.mxu0 0
    %142 = vmatprep.subr.bf16.mxu0 0
    %143 = vmatpush1.bf16.msra.mxu0 0
    %144 = vmatprep.subr.bf16.mxu0 0
    %145 = vmatpush1.bf16.msra.mxu0 0
    %146 = vmatprep.subr.bf16.mxu0 0
    %147 = vmatpush1.bf16.msra.mxu0 0
    %148 = vmatprep.subr.bf16.mxu0 0
    %149 = vmatpush1.bf16.msra.mxu0 0
    %150 = vmatprep.subr.bf16.mxu0 0
    %151 = vmatpush1.bf16.msra.mxu0 0
    %152 = vmatprep.subr.bf16.mxu0 0
    %153 = vmatpush1.bf16.msra.mxu0 0
    %154 = vmatprep.subr.bf16.mxu0 0
    %155 = vmatpush1.bf16.msra.mxu0 0
    %156 = vmatprep.subr.bf16.mxu0 0
    %157 = vmatpush1.bf16.msra.mxu0 0
    %158 = vmatprep.subr.bf16.mxu0 0
    %159 = vmatpush1.bf16.msra.mxu0 0
    %160 = vmatprep.subr.bf16.mxu0 0
    %161 = vmatpush1.bf16.msra.mxu0 0
    %162 = vmatprep.subr.bf16.mxu0 0
    %163 = vmatpush1.bf16.msra.mxu0 0
    %164 = vmatprep.mubr.bf16.mxu0 0
    %165 = vmatmul.mubr.bf16.gmra.mrb[0].mxu0 %v130
    %v166 = vpop.f32.mrb[0].mxu0
    %v167 = vadd.f32 %v113, %v166
    %v168 = vpop.f32.mrb[0].mxu0
    %v169 = vadd.f32 %v117, %v168
    %v170 = vpop.f32.mrb[0].mxu0
    %v171 = vpop.f32.mrb[0].mxu0
    %172 = vdwg.mxu0
    %v173 = vmul.f32 %v167, 0.1
    %v174 = vmul.f32 %v169, 0.1
    %v175 = vmax.f32 %v167, %v173
    %v176 = vmax.f32 %v169, %v174
    %v177 = vpack.c.bf16 %v175, %v175
    %v178 = vpack.c.bf16 %v176, %v176
    %v179 = vld [vmem:[#allocation7] sm:$0xff]
    %v180 = vld [vmem:[#allocation7 + $0x8] sm:$0xff]
    %v181 = vld [vmem:[#allocation7 + $0x10] sm:$0xff]
    %v182 = vld [vmem:[#allocation7 + $0x18] sm:$0xff]
    %v183 = vld [vmem:[#allocation7 + $0x20] sm:$0xff]
    %v184 = vld [vmem:[#allocation7 + $0x28] sm:$0xff]
    %v185 = vld [vmem:[#allocation7 + $0x30] sm:$0xff]
    %v186 = vld [vmem:[#allocation7 + $0x38] sm:$0xff]
    %v187 = vld [vmem:[#allocation7 + $0x40] sm:$0xff]
    %v188 = vld [vmem:[#allocation7 + $0x48] sm:$0xff]
    %v189 = vld [vmem:[#allocation7 + $0x50] sm:$0xff]
    %v190 = vld [vmem:[#allocation7 + $0x58] sm:$0xff]
    %v191 = vld [vmem:[#allocation7 + $0x60] sm:$0xff]
    %v192 = vld [vmem:[#allocation7 + $0x68] sm:$0xff]
    %v193 = vld [vmem:[#allocation7 + $0x70] sm:$0xff]
    %v194 = vld [vmem:[#allocation7 + $0x78] sm:$0xff]
    %v195 = vld [vmem:[#allocation7 + $0x80] sm:$0xff]
    %v196 = vld [vmem:[#allocation7 + $0x88] sm:$0xff]
    %v197 = vld [vmem:[#allocation7 + $0x90] sm:$0xff]
    %v198 = vld [vmem:[#allocation7 + $0x98] sm:$0xff]
    %v199 = vld [vmem:[#allocation7 + $0xa0] sm:$0xff]
    %v200 = vld [vmem:[#allocation7 + $0xa8] sm:$0xff]
    %v201 = vld [vmem:[#allocation7 + $0xb0] sm:$0xff]
    %v202 = vld [vmem:[#allocation7 + $0xb8] sm:$0xff]
    %v203 = vld [vmem:[#allocation7 + $0xc0] sm:$0xff]
    %v204 = vld [vmem:[#allocation7 + $0xc8] sm:$0xff]
    %v205 = vld [vmem:[#allocation7 + $0xd0] sm:$0xff]
    %v206 = vld [vmem:[#allocation7 + $0xd8] sm:$0xff]
    %v207 = vld [vmem:[#allocation7 + $0xe0] sm:$0xff]
    %v208 = vld [vmem:[#allocation7 + $0xe8] sm:$0xff]
    %v209 = vld [vmem:[#allocation7 + $0xf0] sm:$0xff]
    %v210 = vld [vmem:[#allocation7 + $0xf8] sm:$0xff]
    %v211 = vlaneseq
    %v212 = vshrl.u32 %v211, 7
    %v213 = vsub.s32 1, %v212
    %v214 = vrot.slane %v94, %v213
    %v215 = vlaneseq
    %v216 = vshrl.u32 %v215, 7
    %v217 = vsub.s32 5, %v216
    %v218 = vrot.slane %v94, %v217
    %v221 = vlaneseq
    %v222 = vshrl.u32 %v221, 7
    %v223 = vsub.s32 1, %v222
    %v224 = vrot.slane %v214, %v223
    %v225 = vlaneseq
    %v226 = vshrl.u32 %v225, 7
    %v227 = vsub.s32 1, %v226
    %v228 = vrot.slane %v218, %v227
    %v261 = vunpack.c.l.b16 %v179
    %v262 = vunpack.c.h.b16 %v179
    %v263 = vunpack.c.l.b16 %v180
    %v264 = vunpack.c.h.b16 %v180
    %v265 = vunpack.c.l.b16 %v181
    %v266 = vunpack.c.h.b16 %v181
    %v267 = vunpack.c.l.b16 %v182
    %v268 = vunpack.c.h.b16 %v182
    %v269 = vunpack.c.l.b16 %v183
    %v270 = vunpack.c.h.b16 %v183
    %v271 = vunpack.c.l.b16 %v184
    %v272 = vunpack.c.h.b16 %v184
    %v273 = vunpack.c.l.b16 %v185
    %v274 = vunpack.c.h.b16 %v185
    %v275 = vunpack.c.l.b16 %v186
    %v276 = vunpack.c.h.b16 %v186
    %v277 = vunpack.c.l.b16 %v187
    %v278 = vunpack.c.h.b16 %v187
    %v279 = vunpack.c.l.b16 %v188
    %v280 = vunpack.c.h.b16 %v188
    %v281 = vunpack.c.l.b16 %v189
    %v282 = vunpack.c.h.b16 %v189
    %v283 = vunpack.c.l.b16 %v190
    %v284 = vunpack.c.h.b16 %v190
    %v285 = vunpack.c.l.b16 %v191
    %v286 = vunpack.c.h.b16 %v191
    %v287 = vunpack.c.l.b16 %v192
    %v288 = vunpack.c.h.b16 %v192
    %v289 = vunpack.c.l.b16 %v193
    %v290 = vunpack.c.h.b16 %v193
    %v291 = vunpack.c.l.b16 %v194
    %v292 = vunpack.c.h.b16 %v194
    %v293 = vunpack.c.l.b16 %v195
    %v294 = vunpack.c.h.b16 %v195
    %v295 = vunpack.c.l.b16 %v196
    %v296 = vunpack.c.h.b16 %v196
    %v297 = vunpack.c.l.b16 %v197
    %v298 = vunpack.c.h.b16 %v197
    %v299 = vunpack.c.l.b16 %v198
    %v300 = vunpack.c.h.b16 %v198
    %v301 = vunpack.c.l.b16 %v199
    %v302 = vunpack.c.h.b16 %v199
    %v303 = vunpack.c.l.b16 %v200
    %v304 = vunpack.c.h.b16 %v200
    %v305 = vunpack.c.l.b16 %v201
    %v306 = vunpack.c.h.b16 %v201
    %v307 = vunpack.c.l.b16 %v202
    %v308 = vunpack.c.h.b16 %v202
    %v309 = vunpack.c.l.b16 %v203
    %v310 = vunpack.c.h.b16 %v203
    %v311 = vunpack.c.l.b16 %v204
    %v312 = vunpack.c.h.b16 %v204
    %v313 = vunpack.c.l.b16 %v205
    %v314 = vunpack.c.h.b16 %v205
    %v315 = vunpack.c.l.b16 %v206
    %v316 = vunpack.c.h.b16 %v206
    %v317 = vunpack.c.l.b16 %v207
    %v318 = vunpack.c.h.b16 %v207
    %v319 = vunpack.c.l.b16 %v208
    %v320 = vunpack.c.h.b16 %v208
    %v321 = vunpack.c.l.b16 %v209
    %v322 = vunpack.c.h.b16 %v209
    %v323 = vunpack.c.l.b16 %v210
    %v324 = vunpack.c.h.b16 %v210
    %v325 = vpack.c.b16 %v263, %v261
    %v326 = vpack.c.b16 %v264, %v262
    %v327 = vpack.c.b16 %v267, %v265
    %v328 = vpack.c.b16 %v268, %v266
    %v329 = vpack.c.b16 %v271, %v269
    %v330 = vpack.c.b16 %v272, %v270
    %v331 = vpack.c.b16 %v275, %v273
    %v332 = vpack.c.b16 %v276, %v274
    %v333 = vpack.c.b16 %v279, %v277
    %v334 = vpack.c.b16 %v280, %v278
    %v335 = vpack.c.b16 %v283, %v281
    %v336 = vpack.c.b16 %v284, %v282
    %v337 = vpack.c.b16 %v287, %v285
    %v338 = vpack.c.b16 %v288, %v286
    %v339 = vpack.c.b16 %v291, %v289
    %v340 = vpack.c.b16 %v292, %v290
    %v341 = vpack.c.b16 %v295, %v293
    %v342 = vpack.c.b16 %v296, %v294
    %v343 = vpack.c.b16 %v299, %v297
    %v344 = vpack.c.b16 %v300, %v298
    %v345 = vpack.c.b16 %v303, %v301
    %v346 = vpack.c.b16 %v304, %v302
    %v347 = vpack.c.b16 %v307, %v305
    %v348 = vpack.c.b16 %v308, %v306
    %v349 = vpack.c.b16 %v311, %v309
    %v350 = vpack.c.b16 %v312, %v310
    %v351 = vpack.c.b16 %v315, %v313
    %v352 = vpack.c.b16 %v316, %v314
    %v353 = vpack.c.b16 %v319, %v317
    %v354 = vpack.c.b16 %v320, %v318
    %v355 = vpack.c.b16 %v323, %v321
    %v356 = vpack.c.b16 %v324, %v322
    %389 = vmatprep.subr.bf16.mxu0 %v326
    %390 = vmatpush1.bf16.msra.mxu0 %v325
    %391 = vmatprep.subr.bf16.mxu0 %v328
    %392 = vmatpush1.bf16.msra.mxu0 %v327
    %393 = vmatprep.subr.bf16.mxu0 %v330
    %394 = vmatpush1.bf16.msra.mxu0 %v329
    %395 = vmatprep.subr.bf16.mxu0 %v332
    %396 = vmatpush1.bf16.msra.mxu0 %v331
    %397 = vmatprep.subr.bf16.mxu0 %v334
    %398 = vmatpush1.bf16.msra.mxu0 %v333
    %399 = vmatprep.subr.bf16.mxu0 %v336
    %400 = vmatpush1.bf16.msra.mxu0 %v335
    %401 = vmatprep.subr.bf16.mxu0 %v338
    %402 = vmatpush1.bf16.msra.mxu0 %v337
    %403 = vmatprep.subr.bf16.mxu0 %v340
    %404 = vmatpush1.bf16.msra.mxu0 %v339
    %405 = vmatprep.subr.bf16.mxu0 %v342
    %406 = vmatpush1.bf16.msra.mxu0 %v341
    %407 = vmatprep.subr.bf16.mxu0 %v344
    %408 = vmatpush1.bf16.msra.mxu0 %v343
    %409 = vmatprep.subr.bf16.mxu0 %v346
    %410 = vmatpush1.bf16.msra.mxu0 %v345
    %411 = vmatprep.subr.bf16.mxu0 %v348
    %412 = vmatpush1.bf16.msra.mxu0 %v347
    %413 = vmatprep.subr.bf16.mxu0 %v350
    %414 = vmatpush1.bf16.msra.mxu0 %v349
    %415 = vmatprep.subr.bf16.mxu0 %v352
    %416 = vmatpush1.bf16.msra.mxu0 %v351
    %417 = vmatprep.subr.bf16.mxu0 %v354
    %418 = vmatpush1.bf16.msra.mxu0 %v353
    %419 = vmatprep.subr.bf16.mxu0 %v356
    %420 = vmatpush1.bf16.msra.mxu0 %v355
    %421 = vmatprep.mubr.bf16.mxu0 %v178
    %422 = vmatmul.mubr.bf16.gmra.mrb[0].mxu0 %v177
    %v423 = vpop.f32.mrb[0].mxu0
    %v424 = vadd.f32 %v224, %v423
    %v425 = vpop.f32.mrb[0].mxu0
    %v426 = vadd.f32 %v228, %v425
    %v427 = vpop.f32.mrb[0].mxu0
    %v428 = vpop.f32.mrb[0].mxu0
    %429 = vdwg.mxu0
    %v430 = vmul.f32 %v424, 0.1
    %v431 = vmul.f32 %v426, 0.1
    %v432 = vmax.f32 %v424, %v430
    %v433 = vmax.f32 %v426, %v431
    %v434 = vpack.c.bf16 %v432, %v432
    %v435 = vpack.c.bf16 %v433, %v433
    %v436 = vld [vmem:[#allocation8] sm:$0xff]
    %v437 = vld [vmem:[#allocation8 + $0x8] sm:$0xff]
    %v438 = vld [vmem:[#allocation8 + $0x10] sm:$0xff]
    %v439 = vld [vmem:[#allocation8 + $0x18] sm:$0xff]
    %v440 = vld [vmem:[#allocation8 + $0x20] sm:$0xff]
    %v441 = vld [vmem:[#allocation8 + $0x28] sm:$0xff]
    %v442 = vld [vmem:[#allocation8 + $0x30] sm:$0xff]
    %v443 = vld [vmem:[#allocation8 + $0x38] sm:$0xff]
    %v444 = vld [vmem:[#allocation8 + $0x40] sm:$0xff]
    %v445 = vld [vmem:[#allocation8 + $0x48] sm:$0xff]
    %v446 = vld [vmem:[#allocation8 + $0x50] sm:$0xff]
    %v447 = vld [vmem:[#allocation8 + $0x58] sm:$0xff]
    %v448 = vld [vmem:[#allocation8 + $0x60] sm:$0xff]
    %v449 = vld [vmem:[#allocation8 + $0x68] sm:$0xff]
    %v450 = vld [vmem:[#allocation8 + $0x70] sm:$0xff]
    %v451 = vld [vmem:[#allocation8 + $0x78] sm:$0xff]
    %v452 = vld [vmem:[#allocation8 + $0x80] sm:$0xff]
    %v453 = vld [vmem:[#allocation8 + $0x88] sm:$0xff]
    %v454 = vld [vmem:[#allocation8 + $0x90] sm:$0xff]
    %v455 = vld [vmem:[#allocation8 + $0x98] sm:$0xff]
    %v456 = vld [vmem:[#allocation8 + $0xa0] sm:$0xff]
    %v457 = vld [vmem:[#allocation8 + $0xa8] sm:$0xff]
    %v458 = vld [vmem:[#allocation8 + $0xb0] sm:$0xff]
    %v459 = vld [vmem:[#allocation8 + $0xb8] sm:$0xff]
    %v460 = vld [vmem:[#allocation8 + $0xc0] sm:$0xff]
    %v461 = vld [vmem:[#allocation8 + $0xc8] sm:$0xff]
    %v462 = vld [vmem:[#allocation8 + $0xd0] sm:$0xff]
    %v463 = vld [vmem:[#allocation8 + $0xd8] sm:$0xff]
    %v464 = vld [vmem:[#allocation8 + $0xe0] sm:$0xff]
    %v465 = vld [vmem:[#allocation8 + $0xe8] sm:$0xff]
    %v466 = vld [vmem:[#allocation8 + $0xf0] sm:$0xff]
    %v467 = vld [vmem:[#allocation8 + $0xf8] sm:$0xff]
    %v468 = vlaneseq
    %v469 = vshrl.u32 %v468, 7
    %v470 = vsub.s32 2, %v469
    %v471 = vrot.slane %v94, %v470
    %v472 = vlaneseq
    %v473 = vshrl.u32 %v472, 7
    %v474 = vsub.s32 6, %v473
    %v475 = vrot.slane %v94, %v474
    %v478 = vlaneseq
    %v479 = vshrl.u32 %v478, 7
    %v480 = vsub.s32 2, %v479
    %v481 = vrot.slane %v471, %v480
    %v482 = vlaneseq
    %v483 = vshrl.u32 %v482, 7
    %v484 = vsub.s32 2, %v483
    %v485 = vrot.slane %v475, %v484
    %v518 = vunpack.c.l.b16 %v436
    %v519 = vunpack.c.h.b16 %v436
    %v520 = vunpack.c.l.b16 %v437
    %v521 = vunpack.c.h.b16 %v437
    %v522 = vunpack.c.l.b16 %v438
    %v523 = vunpack.c.h.b16 %v438
    %v524 = vunpack.c.l.b16 %v439
    %v525 = vunpack.c.h.b16 %v439
    %v526 = vunpack.c.l.b16 %v440
    %v527 = vunpack.c.h.b16 %v440
    %v528 = vunpack.c.l.b16 %v441
    %v529 = vunpack.c.h.b16 %v441
    %v530 = vunpack.c.l.b16 %v442
    %v531 = vunpack.c.h.b16 %v442
    %v532 = vunpack.c.l.b16 %v443
    %v533 = vunpack.c.h.b16 %v443
    %v534 = vunpack.c.l.b16 %v444
    %v535 = vunpack.c.h.b16 %v444
    %v536 = vunpack.c.l.b16 %v445
    %v537 = vunpack.c.h.b16 %v445
    %v538 = vunpack.c.l.b16 %v446
    %v539 = vunpack.c.h.b16 %v446
    %v540 = vunpack.c.l.b16 %v447
    %v541 = vunpack.c.h.b16 %v447
    %v542 = vunpack.c.l.b16 %v448
    %v543 = vunpack.c.h.b16 %v448
    %v544 = vunpack.c.l.b16 %v449
    %v545 = vunpack.c.h.b16 %v449
    %v546 = vunpack.c.l.b16 %v450
    %v547 = vunpack.c.h.b16 %v450
    %v548 = vunpack.c.l.b16 %v451
    %v549 = vunpack.c.h.b16 %v451
    %v550 = vunpack.c.l.b16 %v452
    %v551 = vunpack.c.h.b16 %v452
    %v552 = vunpack.c.l.b16 %v453
    %v553 = vunpack.c.h.b16 %v453
    %v554 = vunpack.c.l.b16 %v454
    %v555 = vunpack.c.h.b16 %v454
    %v556 = vunpack.c.l.b16 %v455
    %v557 = vunpack.c.h.b16 %v455
    %v558 = vunpack.c.l.b16 %v456
    %v559 = vunpack.c.h.b16 %v456
    %v560 = vunpack.c.l.b16 %v457
    %v561 = vunpack.c.h.b16 %v457
    %v562 = vunpack.c.l.b16 %v458
    %v563 = vunpack.c.h.b16 %v458
    %v564 = vunpack.c.l.b16 %v459
    %v565 = vunpack.c.h.b16 %v459
    %v566 = vunpack.c.l.b16 %v460
    %v567 = vunpack.c.h.b16 %v460
    %v568 = vunpack.c.l.b16 %v461
    %v569 = vunpack.c.h.b16 %v461
    %v570 = vunpack.c.l.b16 %v462
    %v571 = vunpack.c.h.b16 %v462
    %v572 = vunpack.c.l.b16 %v463
    %v573 = vunpack.c.h.b16 %v463
    %v574 = vunpack.c.l.b16 %v464
    %v575 = vunpack.c.h.b16 %v464
    %v576 = vunpack.c.l.b16 %v465
    %v577 = vunpack.c.h.b16 %v465
    %v578 = vunpack.c.l.b16 %v466
    %v579 = vunpack.c.h.b16 %v466
    %v580 = vunpack.c.l.b16 %v467
    %v581 = vunpack.c.h.b16 %v467
    %v582 = vpack.c.b16 %v520, %v518
    %v583 = vpack.c.b16 %v521, %v519
    %v584 = vpack.c.b16 %v524, %v522
    %v585 = vpack.c.b16 %v525, %v523
    %v586 = vpack.c.b16 %v528, %v526
    %v587 = vpack.c.b16 %v529, %v527
    %v588 = vpack.c.b16 %v532, %v530
    %v589 = vpack.c.b16 %v533, %v531
    %v590 = vpack.c.b16 %v536, %v534
    %v591 = vpack.c.b16 %v537, %v535
    %v592 = vpack.c.b16 %v540, %v538
    %v593 = vpack.c.b16 %v541, %v539
    %v594 = vpack.c.b16 %v544, %v542
    %v595 = vpack.c.b16 %v545, %v543
    %v596 = vpack.c.b16 %v548, %v546
    %v597 = vpack.c.b16 %v549, %v547
    %v598 = vpack.c.b16 %v552, %v550
    %v599 = vpack.c.b16 %v553, %v551
    %v600 = vpack.c.b16 %v556, %v554
    %v601 = vpack.c.b16 %v557, %v555
    %v602 = vpack.c.b16 %v560, %v558
    %v603 = vpack.c.b16 %v561, %v559
    %v604 = vpack.c.b16 %v564, %v562
    %v605 = vpack.c.b16 %v565, %v563
    %v606 = vpack.c.b16 %v568, %v566
    %v607 = vpack.c.b16 %v569, %v567
    %v608 = vpack.c.b16 %v572, %v570
    %v609 = vpack.c.b16 %v573, %v571
    %v610 = vpack.c.b16 %v576, %v574
    %v611 = vpack.c.b16 %v577, %v575
    %v612 = vpack.c.b16 %v580, %v578
    %v613 = vpack.c.b16 %v581, %v579
    %646 = vmatprep.subr.bf16.mxu0 %v583
    %647 = vmatpush1.bf16.msra.mxu0 %v582
    %648 = vmatprep.subr.bf16.mxu0 %v585
    %649 = vmatpush1.bf16.msra.mxu0 %v584
    %650 = vmatprep.subr.bf16.mxu0 %v587
    %651 = vmatpush1.bf16.msra.mxu0 %v586
    %652 = vmatprep.subr.bf16.mxu0 %v589
    %653 = vmatpush1.bf16.msra.mxu0 %v588
    %654 = vmatprep.subr.bf16.mxu0 %v591
    %655 = vmatpush1.bf16.msra.mxu0 %v590
    %656 = vmatprep.subr.bf16.mxu0 %v593
    %657 = vmatpush1.bf16.msra.mxu0 %v592
    %658 = vmatprep.subr.bf16.mxu0 %v595
    %659 = vmatpush1.bf16.msra.mxu0 %v594
    %660 = vmatprep.subr.bf16.mxu0 %v597
    %661 = vmatpush1.bf16.msra.mxu0 %v596
    %662 = vmatprep.subr.bf16.mxu0 %v599
    %663 = vmatpush1.bf16.msra.mxu0 %v598
    %664 = vmatprep.subr.bf16.mxu0 %v601
    %665 = vmatpush1.bf16.msra.mxu0 %v600
    %666 = vmatprep.subr.bf16.mxu0 %v603
    %667 = vmatpush1.bf16.msra.mxu0 %v602
    %668 = vmatprep.subr.bf16.mxu0 %v605
    %669 = vmatpush1.bf16.msra.mxu0 %v604
    %670 = vmatprep.subr.bf16.mxu0 %v607
    %671 = vmatpush1.bf16.msra.mxu0 %v606
    %672 = vmatprep.subr.bf16.mxu0 %v609
    %673 = vmatpush1.bf16.msra.mxu0 %v608
    %674 = vmatprep.subr.bf16.mxu0 %v611
    %675 = vmatpush1.bf16.msra.mxu0 %v610
    %676 = vmatprep.subr.bf16.mxu0 %v613
    %677 = vmatpush1.bf16.msra.mxu0 %v612
    %678 = vmatprep.mubr.bf16.mxu0 %v435
    %679 = vmatmul.mubr.bf16.gmra.mrb[0].mxu0 %v434
    %v680 = vpop.f32.mrb[0].mxu0
    %v681 = vadd.f32 %v481, %v680
    %v682 = vpop.f32.mrb[0].mxu0
    %v683 = vadd.f32 %v485, %v682
    %v684 = vpop.f32.mrb[0].mxu0
    %v685 = vpop.f32.mrb[0].mxu0
    %686 = vdwg.mxu0
    %v687 = vmul.f32 %v681, 0.1
    %v688 = vmul.f32 %v683, 0.1
    %v689 = vmax.f32 %v681, %v687
    %v690 = vmax.f32 %v683, %v688
    %v691 = vpack.c.bf16 %v689, %v689
    %v692 = vpack.c.bf16 %v690, %v690
    %v693 = vld [vmem:[#allocation10] sm:$0xf]
    %v694 = vld [vmem:[#allocation10 + $0x4] sm:$0xf]
    %v695 = vld [vmem:[#allocation10 + $0x8] sm:$0xf]
    %v696 = vld [vmem:[#allocation10 + $0xc] sm:$0xf]
    %v697 = vld [vmem:[#allocation10 + $0x10] sm:$0xf]
    %v698 = vld [vmem:[#allocation10 + $0x14] sm:$0xf]
    %v699 = vld [vmem:[#allocation10 + $0x18] sm:$0xf]
    %v700 = vld [vmem:[#allocation10 + $0x1c] sm:$0xf]
    %v701 = vld [vmem:[#allocation10 + $0x20] sm:$0xf]
    %v702 = vld [vmem:[#allocation10 + $0x24] sm:$0xf]
    %v703 = vld [vmem:[#allocation10 + $0x28] sm:$0xf]
    %v704 = vld [vmem:[#allocation10 + $0x2c] sm:$0xf]
    %v705 = vld [vmem:[#allocation10 + $0x30] sm:$0xf]
    %v706 = vld [vmem:[#allocation10 + $0x34] sm:$0xf]
    %v707 = vld [vmem:[#allocation10 + $0x38] sm:$0xf]
    %v708 = vld [vmem:[#allocation10 + $0x3c] sm:$0xf]
    %v709 = vld [vmem:[#allocation10 + $0x40] sm:$0xf]
    %v710 = vld [vmem:[#allocation10 + $0x44] sm:$0xf]
    %v711 = vld [vmem:[#allocation10 + $0x48] sm:$0xf]
    %v712 = vld [vmem:[#allocation10 + $0x4c] sm:$0xf]
    %v713 = vld [vmem:[#allocation10 + $0x50] sm:$0xf]
    %v714 = vld [vmem:[#allocation10 + $0x54] sm:$0xf]
    %v715 = vld [vmem:[#allocation10 + $0x58] sm:$0xf]
    %v716 = vld [vmem:[#allocation10 + $0x5c] sm:$0xf]
    %v717 = vld [vmem:[#allocation10 + $0x60] sm:$0xf]
    %v718 = vld [vmem:[#allocation10 + $0x64] sm:$0xf]
    %v719 = vld [vmem:[#allocation10 + $0x68] sm:$0xf]
    %v720 = vld [vmem:[#allocation10 + $0x6c] sm:$0xf]
    %v721 = vld [vmem:[#allocation10 + $0x70] sm:$0xf]
    %v722 = vld [vmem:[#allocation10 + $0x74] sm:$0xf]
    %v723 = vld [vmem:[#allocation10 + $0x78] sm:$0xf]
    %v724 = vld [vmem:[#allocation10 + $0x7c] sm:$0xf]
    %v725 = vld [vmem:[%s6] sm:$0x1]
    %v727 = vlaneseq
    %v728 = vshrl.u32 %v727, 7
    %v729 = vsub.s32 0, %v728
    %v730 = vrot.slane %v725, %v729
    %v764 = vunpack.c.l.b16 %v693
    %v765 = vunpack.c.l.b16 %v694
    %v766 = vunpack.c.l.b16 %v695
    %v767 = vunpack.c.l.b16 %v696
    %v768 = vunpack.c.l.b16 %v697
    %v769 = vunpack.c.l.b16 %v698
    %v770 = vunpack.c.l.b16 %v699
    %v771 = vunpack.c.l.b16 %v700
    %v772 = vunpack.c.l.b16 %v701
    %v773 = vunpack.c.l.b16 %v702
    %v774 = vunpack.c.l.b16 %v703
    %v775 = vunpack.c.l.b16 %v704
    %v776 = vunpack.c.l.b16 %v705
    %v777 = vunpack.c.l.b16 %v706
    %v778 = vunpack.c.l.b16 %v707
    %v779 = vunpack.c.l.b16 %v708
    %v780 = vunpack.c.l.b16 %v709
    %v781 = vunpack.c.l.b16 %v710
    %v782 = vunpack.c.l.b16 %v711
    %v783 = vunpack.c.l.b16 %v712
    %v784 = vunpack.c.l.b16 %v713
    %v785 = vunpack.c.l.b16 %v714
    %v786 = vunpack.c.l.b16 %v715
    %v787 = vunpack.c.l.b16 %v716
    %v788 = vunpack.c.l.b16 %v717
    %v789 = vunpack.c.l.b16 %v718
    %v790 = vunpack.c.l.b16 %v719
    %v791 = vunpack.c.l.b16 %v720
    %v792 = vunpack.c.l.b16 %v721
    %v793 = vunpack.c.l.b16 %v722
    %v794 = vunpack.c.l.b16 %v723
    %v795 = vunpack.c.l.b16 %v724
    %v796 = vpack.c.b16 %v765, %v764
    %v797 = vpack.c.b16 %v767, %v766
    %v798 = vpack.c.b16 %v769, %v768
    %v799 = vpack.c.b16 %v771, %v770
    %v800 = vpack.c.b16 %v773, %v772
    %v801 = vpack.c.b16 %v775, %v774
    %v802 = vpack.c.b16 %v777, %v776
    %v803 = vpack.c.b16 %v779, %v778
    %v804 = vpack.c.b16 %v781, %v780
    %v805 = vpack.c.b16 %v783, %v782
    %v806 = vpack.c.b16 %v785, %v784
    %v807 = vpack.c.b16 %v787, %v786
    %v808 = vpack.c.b16 %v789, %v788
    %v809 = vpack.c.b16 %v791, %v790
    %v810 = vpack.c.b16 %v793, %v792
    %v811 = vpack.c.b16 %v795, %v794
    %828 = vmatprep.subr.bf16.mxu0 0
    %829 = vmatpush1.bf16.msra.mxu0 %v796
    %830 = vmatprep.subr.bf16.mxu0 0
    %831 = vmatpush1.bf16.msra.mxu0 %v797
    %832 = vmatprep.subr.bf16.mxu0 0
    %833 = vmatpush1.bf16.msra.mxu0 %v798
    %834 = vmatprep.subr.bf16.mxu0 0
    %835 = vmatpush1.bf16.msra.mxu0 %v799
    %836 = vmatprep.subr.bf16.mxu0 0
    %837 = vmatpush1.bf16.msra.mxu0 %v800
    %838 = vmatprep.subr.bf16.mxu0 0
    %839 = vmatpush1.bf16.msra.mxu0 %v801
    %840 = vmatprep.subr.bf16.mxu0 0
    %841 = vmatpush1.bf16.msra.mxu0 %v802
    %842 = vmatprep.subr.bf16.mxu0 0
    %843 = vmatpush1.bf16.msra.mxu0 %v803
    %844 = vmatprep.subr.bf16.mxu0 0
    %845 = vmatpush1.bf16.msra.mxu0 %v804
    %846 = vmatprep.subr.bf16.mxu0 0
    %847 = vmatpush1.bf16.msra.mxu0 %v805
    %848 = vmatprep.subr.bf16.mxu0 0
    %849 = vmatpush1.bf16.msra.mxu0 %v806
    %850 = vmatprep.subr.bf16.mxu0 0
    %851 = vmatpush1.bf16.msra.mxu0 %v807
    %852 = vmatprep.subr.bf16.mxu0 0
    %853 = vmatpush1.bf16.msra.mxu0 %v808
    %854 = vmatprep.subr.bf16.mxu0 0
    %855 = vmatpush1.bf16.msra.mxu0 %v809
    %856 = vmatprep.subr.bf16.mxu0 0
    %857 = vmatpush1.bf16.msra.mxu0 %v810
    %858 = vmatprep.subr.bf16.mxu0 0
    %859 = vmatpush1.bf16.msra.mxu0 %v811
    %860 = vmatprep.mubr.bf16.mxu0 %v692
    %861 = vmatmul.mubr.bf16.gmra.mrb[0].mxu0 %v691
    %v862 = vpop.f32.mrb[0].mxu0
    %v863 = vadd.f32 %v730, %v862
    %v864 = vpop.f32.mrb[0].mxu0
    %v865 = vpop.f32.mrb[0].mxu0
    %v866 = vpop.f32.mrb[0].mxu0
    %867 = vdwg.mxu0
    %868 = vst [vmem:[#allocation11] sm:$0xff] %v863
    // Predicated region
    $region50: #{tpu_custom_call.1} parent=1 // pred_check
      _
    $region51: #{tpu_custom_call.1} parent=1 // pred_check_branch
      %870 = sbr.rel (0) target = $region53
    $region52: #{tpu_custom_call.1} parent=1 // pred_region
      %s872 = ssub.s32 128, 128
      %873 = vsyncadd [#allocation4], %s872
      %s875 = sshll.u32 [#allocation11], 4
      %s876 = int_to_ptr.vmem [resolvable:$true] %s875
      %878 = dma.vmem_to_hbm [thread:$0]  %s876, 128, %s7, [#allocation4]
    $region53: #{tpu_custom_call.1} parent=1 // pred_fallthru
      _
    // Predicated region
    $region54: #{tpu_custom_call.1} parent=1 // pred_check
      _
    $region55: #{tpu_custom_call.1} parent=1 // pred_check_branch
      %880 = sbr.rel (0) target = $region57
    $region56: #{tpu_custom_call.1} parent=1 // pred_region
      %881 = dma.done [#allocation4], 128
    $region57: #{tpu_custom_call.1} parent=1 // pred_fallthru
      _
    %882 = vsyncpa [#allocation3], 1
    %883 = vsyncpa [#allocation6], 1
    %884 = vsyncpa [#allocation9], 1
    %885 = vsyncpa [#allocation4], 1

</llo_original>
